<compile_context>
chip_gen: v6e
topology: v6e:2x2x1
jax: 0.10.0
libtpu: 0.0.40
codegen_flags: <defaults>
</compile_context>

<pallas_src>
import functools

import jax
import jax.numpy as jnp
from jax.experimental import pallas as pl
from jax.experimental.pallas import tpu as pltpu


def _round_up(x, m):
    return ((x + m - 1) // m) * m


def _linear_kernel(x_ref, w_ref, b_ref, o_ref):
    # x_ref: (tm, Kp), w_ref: (Kp, Np), b_ref: (1, Np), o_ref: (tm, Np)
    acc = jnp.dot(x_ref[...], w_ref[...], preferred_element_type=jnp.float32)
    o_ref[...] = (acc + b_ref[...]).astype(o_ref.dtype)


@functools.partial(jax.jit, static_argnames=("tm_max",))
def linear_pointwise(x, weight, bias, *, tm_max=1024):
    """x: (B, D1, D2, Cin); weight: (Cout, Cin); bias: (Cout,) -> (B, D1, D2, Cout)."""
    B, D1, D2, Cin = x.shape
    Cout = weight.shape[0]
    M = B * D1 * D2

    # Lane-packing factor: pack P original rows into one lane-dense packed row.
    P = 128 // Cin if (Cin < 128 and 128 % Cin == 0) else 1
    Kp = P * Cin          # packed contraction dim (128 when packing applies)
    Np = P * Cout         # packed output dim (multiple of 128 when packing)

    x2d = x.reshape(M, Cin)

    # Choose packed-row tile: large (approach HBM roofline), multiple of 8,
    # but keep >= 2 grid steps when there is enough work (v7x megacore).
    Mp = pl.cdiv(M, P)
    tm = max(8, min(tm_max, _round_up(pl.cdiv(Mp, 2), 8)))
    Mp_pad = _round_up(Mp, tm)
    M_pad = Mp_pad * P

    if M_pad != M:
        x2d = jnp.pad(x2d, ((0, M_pad - M), (0, 0)))

    # Free row-major reshape into lane-dense packed rows.
    xp = x2d.reshape(Mp_pad, Kp)

    wt = weight.T.astype(x.dtype)                     # (Cin, Cout)
    if P > 1:
        # Block-diagonal weight: kron(I_P, W.T) -> (P*Cin, P*Cout)
        w_in = jnp.kron(jnp.eye(P, dtype=wt.dtype), wt)
        b_in = jnp.tile(bias, P).reshape(1, Np).astype(x.dtype)
    else:
        w_in = wt
        b_in = bias.reshape(1, Np).astype(x.dtype)

    grid = Mp_pad // tm

    # Rough double-buffered working set (bytes), with margin; clamp to a value
    # that is safe on every generation (v5e 128 MiB, v6e 128 MiB, v7x 64 MiB).
    itemsize = jnp.dtype(x.dtype).itemsize
    vmem_bytes = itemsize * (2 * tm * (Kp + Np) + Kp * Np + 8 * Np)
    vmem_bytes = int(min(max(2 * vmem_bytes, 8 << 20), 32 << 20))

    outp = pl.pallas_call(
        _linear_kernel,
        out_shape=jax.ShapeDtypeStruct((Mp_pad, Np), x.dtype),
        grid_spec=pltpu.PrefetchScalarGridSpec(
            num_scalar_prefetch=0,
            grid=(grid,),
            in_specs=[
                pl.BlockSpec((tm, Kp), lambda i: (i, 0)),
                pl.BlockSpec((Kp, Np), lambda i: (0, 0)),   # resident weight
                pl.BlockSpec((1, Np), lambda i: (0, 0)),    # resident bias
            ],
            out_specs=pl.BlockSpec((tm, Np), lambda i: (i, 0)),
        ),
        compiler_params=pltpu.CompilerParams(
            dimension_semantics=("parallel",),
            vmem_limit_bytes=vmem_bytes,
        ),
    )(xp, w_in, b_in)

    # Free row-major unpack, drop padded rows.
    out2d = outp.reshape(M_pad, Cout)[:M]
    return out2d.reshape(B, D1, D2, Cout)


if __name__ == "__main__":
    key = jax.random.PRNGKey(0)
    k_x, k_w, k_b = jax.random.split(key, 3)

    B, D1, D2 = 2, 16, 16
    in_dim, out_dim = 8, 32

    # Deterministic parameter init (mimic Conv2d 1x1: uniform in +-1/sqrt(in_dim)).
    bound = 1.0 / (in_dim ** 0.5)
    weight = jax.random.uniform(k_w, (out_dim, in_dim), jnp.float32, -bound, bound)
    bias = jax.random.uniform(k_b, (out_dim,), jnp.float32, -bound, bound)

    x = jax.random.normal(k_x, (B, D1, D2, in_dim), jnp.float32)

    out = linear_pointwise(x, weight, bias)
    out = jax.block_until_ready(out)

    # Reference check (pure JAX, same math as Conv2d 1x1 on transposed input).
    ref = jnp.einsum("bxyc,oc->bxyo", x, weight) + bias
    assert out.shape == (B, D1, D2, out_dim)
    assert jnp.allclose(out, ref, atol=1e-5, rtol=1e-5)

    print("KERNEL_OK")
</pallas_src>

<mosaic_0001>
module attributes {stable_mosaic.version = 11 : i64} {
  func.func @_linear_kernel(%arg0: i32, %arg1: memref<16x128xf32, #tpu.memory_space<vmem>>, %arg2: memref<128x512xf32, #tpu.memory_space<vmem>>, %arg3: memref<1x512xf32, #tpu.memory_space<vmem>>, %arg4: memref<16x512xf32, #tpu.memory_space<vmem>>) attributes {dimension_semantics = [#tpu.dimension_semantics<parallel>], iteration_bounds = array<i64: 2>, scalar_prefetch = 0 : i64, scratch_operands = 0 : i64, tpu.core_type = #tpu.core_type<tc>, window_params = [{transform_indices = @transform_0, window_bounds = array<i64: 16, 128>}, {pipeline_mode = #tpu.pipeline_mode<synchronous>, transform_indices = @transform_1, window_bounds = array<i64: 128, 512>}, {pipeline_mode = #tpu.pipeline_mode<synchronous>, transform_indices = @transform_2, window_bounds = array<i64: 1, 512>}, {transform_indices = @transform_3, window_bounds = array<i64: 16, 512>}]} {
    %c0 = arith.constant 0 : index
    %c0_0 = arith.constant 0 : index
    %0 = vector.load %arg1[%c0, %c0_0] : memref<16x128xf32, #tpu.memory_space<vmem>>, vector<16x128xf32>
    %c0_1 = arith.constant 0 : index
    %c0_2 = arith.constant 0 : index
    %1 = vector.load %arg2[%c0_1, %c0_2] : memref<128x512xf32, #tpu.memory_space<vmem>>, vector<128x512xf32>
    %cst = arith.constant dense<0.000000e+00> : vector<16x512xf32>
    %2 = tpu.matmul %0, %1, %cst {dimension_numbers = #tpu.dot_dimension_numbers<[1], [0], [0], [1], [0, 0, 1, 1], [], []>} : vector<16x128xf32>, vector<128x512xf32>, vector<16x512xf32> -> vector<16x512xf32>
    %c0_3 = arith.constant 0 : index
    %c0_4 = arith.constant 0 : index
    %3 = vector.load %arg3[%c0_3, %c0_4] : memref<1x512xf32, #tpu.memory_space<vmem>>, vector<1x512xf32>
    %4 = vector.broadcast %3 : vector<1x512xf32> to vector<16x512xf32>
    %5 = arith.addf %2, %4 : vector<16x512xf32>
    %c0_5 = arith.constant 0 : index
    %c0_6 = arith.constant 0 : index
    %6 = vector.load %arg4[%c0_5, %c0_6] : memref<16x512xf32, #tpu.memory_space<vmem>>, vector<16x512xf32>
    tpu.vector_store %arg4[%c0_5, %c0_6], %5 {strides = array<i32>} : memref<16x512xf32, #tpu.memory_space<vmem>>, vector<16x512xf32>,
    return
  }
  func.func @transform_0(%arg0: i32) -> (i32, i32) {
    %c0_i32 = arith.constant 0 : i32
    %c0_i32_0 = arith.constant 0 : i32
    return %arg0, %c0_i32 : i32, i32
  }
  func.func @transform_1(%arg0: i32) -> (i32, i32) {
    %c0_i32 = arith.constant 0 : i32
    %c0_i32_0 = arith.constant 0 : i32
    %c0_i32_1 = arith.constant 0 : i32
    return %c0_i32, %c0_i32_0 : i32, i32
  }
  func.func @transform_2(%arg0: i32) -> (i32, i32) {
    %c0_i32 = arith.constant 0 : i32
    %c0_i32_0 = arith.constant 0 : i32
    %c0_i32_1 = arith.constant 0 : i32
    return %c0_i32, %c0_i32_0 : i32, i32
  }
  func.func @transform_3(%arg0: i32) -> (i32, i32) {
    %c0_i32 = arith.constant 0 : i32
    %c0_i32_0 = arith.constant 0 : i32
    return %arg0, %c0_i32 : i32, i32
  }
}

</mosaic_0001>

<llo_original>
// kernel: tile.8
$region0: #{tile.8}
  #allocation0 [shape = 's32[1]{0}', space=sflag, size = 0x4, scoped, tag = 'scoped memory for tile.8']
  %s0 = inlined_call_operand.vmem [shape: f32[32], index: 0, kind: input, shape index: {}]
  %s1 = inlined_call_operand.vmem [shape: f32[16,32], index: 1, kind: output, shape index: {}]
  // Predicated region
  $region2: #{tile.8} parent=0 // pred_check
    _
  $region3: #{tile.8} parent=0 // pred_check_branch
    %3 = sbr.rel (0) target = $region5
  $region4: #{tile.8} parent=0 // pred_region
    _
  $region5: #{tile.8} parent=0 // pred_fallthru
    _
  %v4 = vld [vmem:[%s0] ss:$0 sm:$0xff]
  %5 = vst [vmem:[%s1] sm:$0xff] %v4
  %s6 = scalar_lea.vmem %s1, 8
  %7 = vst [vmem:[%s6] sm:$0xff] %v4

// kernel: tile.9
$region0: #{tile.9}
  %s0 = inlined_call_operand.vmem [shape: f32[16,32], index: 0, kind: input, shape index: {}]
  %s1 = inlined_call_operand.vmem [shape: f32[1,512], index: 1, kind: output, shape index: {}]
  $region1: #{tile.9} parent=0
    #allocation0 [shape = 'u8[16384]{0}', space=vmem, size = 0x4000, scoped, tag = 'scoped mem for output reshape']
    %v2 = vld [vmem:[%s0] ss:$4 sm:$0xf]
    %vm3 = vcmask 261120
    %4 = vst.msk [vmem:[#allocation0] ss:$8 sm:$0xf] %vm3, %v2
    %s5 = scalar_lea.vmem %s0, 3
    %v6 = vld [vmem:[%s5] ss:$4 sm:$0xf]
    %7 = vrot.lane.b32.xlu0 %v6, 96
    %v8 = vpop.permute.xlu0 %7
    %vm9 = vcmask 1048320
    %10 = vst.msk [vmem:[#allocation0] ss:$8 sm:$0xf] %vm9, %v8
    %s11 = scalar_lea.vmem %s0, 2
    %v12 = vld [vmem:[%s11] ss:$4 sm:$0xf]
    %13 = vrot.lane.b32.xlu0 %v12, 64
    %v14 = vpop.permute.xlu0 %13
    %vm15 = vcmask 785920
    %16 = vst.msk [vmem:[#allocation0] ss:$8 sm:$0xf] %vm15, %v14
    %s17 = scalar_lea.vmem %s0, 1
    %v18 = vld [vmem:[%s17] ss:$4 sm:$0xf]
    %19 = vrot.lane.b32.xlu0 %v18, 32
    %v20 = vpop.permute.xlu0 %19
    %vm21 = vcmask 523520
    %22 = vst.msk [vmem:[#allocation0] ss:$8 sm:$0xf] %vm21, %v20
    %s24 = sshll.u32 1, 1
    %s25 = ssub.s32 %s24, 1
    %v27 = vld [vmem:[#allocation0] sm:%s25]
    %s28 = sshll.u32 1, 1
    %s29 = ssub.s32 %s28, 1
    %30 = vst [vmem:[%s1] sm:%s29] %v27
    %s31 = scalar_lea.vmem [#allocation0], 8
    %v32 = vld [vmem:[%s31] sm:%s25]
    %s33 = sshll.u32 1, 1
    %s34 = ssub.s32 %s33, 1
    %s35 = scalar_lea.vmem %s1, 1
    %36 = vst [vmem:[%s35] sm:%s34] %v32
    %s37 = scalar_lea.vmem [#allocation0], 16
    %v38 = vld [vmem:[%s37] sm:%s25]
    %s39 = sshll.u32 1, 1
    %s40 = ssub.s32 %s39, 1
    %s41 = smul.addr 1, 2
    %s42 = scalar_lea.vmem %s1, %s41
    %43 = vst [vmem:[%s42] sm:%s40] %v38
    %s44 = scalar_lea.vmem [#allocation0], 24
    %v45 = vld [vmem:[%s44] sm:%s25]
    %s46 = sshll.u32 1, 1
    %s47 = ssub.s32 %s46, 1
    %s48 = smul.addr 1, 3
    %s49 = scalar_lea.vmem %s1, %s48
    %50 = vst [vmem:[%s49] sm:%s47] %v45

// kernel: linear_pointwise.1
$region0: #{linear_pointwise.1}
  #allocation0 [shape = 'u32[]', space=smem, size = 0x4, offset = 0x4, fixed_abs, tag = 'smem constant byte address 0x4 - core index']
  #allocation1 [shape = 'u32[144,128]{1,0:T(1,128)}', space=vmem, size = 0x12000, scoped, tag = 'internal scratch']
  %s0 = inlined_call_operand.vmem [shape: f32[32,128], index: 0, kind: input, shape index: {}]
  %s1 = inlined_call_operand.vmem [shape: f32[128,512], index: 1, kind: input, shape index: {}]
  %s2 = inlined_call_operand.vmem [shape: f32[1,512], index: 2, kind: input, shape index: {}]
  %s3 = inlined_call_operand.vmem [shape: f32[32,512], index: 3, kind: output, shape index: {}]
  %s4 = sld [smem:[#allocation0]]
  $region45: #{linear_pointwise.1} parent=0
    _
  %s6 = ssub.s32 1, %s4
  %s7 = scalar_select 0, %s6, %s4
  loop: start=0, step=1, limit=4
  $region2: #{linear_pointwise.1} parent=0 // loop_pre_header
    _
  $region3: #{linear_pointwise.1} parent=0 // loop_header
    %s9 = sphi 0, %s13
    %p10 = scmp.ge.s32.totalorder %s9, 4
    %s19 = sphi 0, %s21
    %s22 = sphi 0, %s19
    %s23 = sphi 0, %s22
    %s39 = sphi 0, %s23
    %s43 = sphi 0, %s43
    %s45 = sphi 0, %s43
    %s46 = sphi 0, %s45
    %s60 = sphi 0, %s46
    %s64 = sphi 0, %s64
    %s66 = sphi 0, %s64
    %s67 = sphi 0, %s66
    %s81 = sphi 0, %s67
    %s87 = sphi 0, %s89
    %s90 = sphi 0, %s87
    %s91 = sphi 0, %s90
    %s107 = sphi 0, %s91
  $region4: #{linear_pointwise.1} parent=0 // loop_header_branch
    %12 = sbr.rel (%p10) target = $region8
  $region5: #{linear_pointwise.1} parent=0 // loop_body
    %s14 = ssub.s32 %s9, 1
    %s15 = ssub.s32 %s9, 2
    %s16 = sadd.s32 %s9, 1
    %s17 = ssub.s32 %s9, %s16
    %p18 = scmp.eq.s32.totalorder %s17, 0
    %s20 = sadd.s32 %s19, 1
    %s21 = scalar_select %p18, %s19, %s20
    %p24 = pneg %p18
    %p25 = scmp.eq.s32.totalorder %s9, 1
    %p26 = por %p24, %p25
    %p27 = scmp.ne.s32.totalorder %s19, %s22
    %p28 = scmp.eq.s32.totalorder %s9, 0
    %p29 = por %p27, %p28
    %p30 = scmp.ne.s32.totalorder %s19, %s22
    %p31 = scmp.eq.s32.totalorder %s14, 1
    %p32 = por %p30, %p31
    %p33 = scmp.ne.s32.totalorder %s22, %s23
    %p34 = scmp.eq.s32.totalorder %s14, 0
    %p35 = por %p33, %p34
    %p36 = scmp.ne.s32.totalorder %s22, %s23
    %p37 = scmp.eq.s32.totalorder %s15, 1
    %p38 = por %p36, %p37
    %p40 = scmp.ne.s32.totalorder %s23, %s39
    %p41 = scmp.eq.s32.totalorder %s15, 0
    %p42 = por %p40, %p41
    %s44 = sadd.s32 %s43, 1
    %p47 = scmp.eq.s32.totalorder %s9, 1
    %p48 = scmp.ne.s32.totalorder %s43, %s45
    %p49 = scmp.eq.s32.totalorder %s9, 0
    %p50 = por %p48, %p49
    %p51 = scmp.ne.s32.totalorder %s43, %s45
    %p52 = scmp.eq.s32.totalorder %s14, 1
    %p53 = por %p51, %p52
    %p54 = scmp.ne.s32.totalorder %s45, %s46
    %p55 = scmp.eq.s32.totalorder %s14, 0
    %p56 = por %p54, %p55
    %p57 = scmp.ne.s32.totalorder %s45, %s46
    %p58 = scmp.eq.s32.totalorder %s15, 1
    %p59 = por %p57, %p58
    %p61 = scmp.ne.s32.totalorder %s46, %s60
    %p62 = scmp.eq.s32.totalorder %s15, 0
    %p63 = por %p61, %p62
    %s65 = sadd.s32 %s64, 1
    %p68 = scmp.eq.s32.totalorder %s9, 1
    %p69 = scmp.ne.s32.totalorder %s64, %s66
    %p70 = scmp.eq.s32.totalorder %s9, 0
    %p71 = por %p69, %p70
    %p72 = scmp.ne.s32.totalorder %s64, %s66
    %p73 = scmp.eq.s32.totalorder %s14, 1
    %p74 = por %p72, %p73
    %p75 = scmp.ne.s32.totalorder %s66, %s67
    %p76 = scmp.eq.s32.totalorder %s14, 0
    %p77 = por %p75, %p76
    %p78 = scmp.ne.s32.totalorder %s66, %s67
    %p79 = scmp.eq.s32.totalorder %s15, 1
    %p80 = por %p78, %p79
    %p82 = scmp.ne.s32.totalorder %s67, %s81
    %p83 = scmp.eq.s32.totalorder %s15, 0
    %p84 = por %p82, %p83
    %s85 = ssub.s32 %s9, %s16
    %p86 = scmp.eq.s32.totalorder %s85, 0
    %s88 = sadd.s32 %s87, 1
    %s89 = scalar_select %p86, %s87, %s88
    %p92 = pneg %p86
    %p93 = scmp.eq.s32.totalorder %s9, 1
    %p94 = por %p92, %p93
    %p95 = scmp.ne.s32.totalorder %s87, %s90
    %p96 = scmp.eq.s32.totalorder %s9, 0
    %p97 = por %p95, %p96
    %p98 = scmp.ne.s32.totalorder %s87, %s90
    %p99 = scmp.eq.s32.totalorder %s14, 1
    %p100 = por %p98, %p99
    %p101 = scmp.ne.s32.totalorder %s90, %s91
    %p102 = scmp.eq.s32.totalorder %s14, 0
    %p103 = por %p101, %p102
    %p104 = scmp.ne.s32.totalorder %s90, %s91
    %p105 = scmp.eq.s32.totalorder %s15, 1
    %p106 = por %p104, %p105
    %p108 = scmp.ne.s32.totalorder %s91, %s107
    %p109 = scmp.eq.s32.totalorder %s15, 0
    %p110 = por %p108, %p109
    %p111 = scmp.le.s32.totalorder 1, %s9
    %p112 = scmp.lt.s32.totalorder %s9, 3
    %p113 = pnand %p111, %p112
    %p114 = pneg %p113
    // Predicated region
    $region9: #{linear_pointwise.1} parent=5 // pred_check
      _
    $region10: #{linear_pointwise.1} parent=5 // pred_check_branch
      %116 = sbr.rel (%p113) target = $region12
    $region11: #{linear_pointwise.1} parent=5 // pred_region
      %s117 = ssub.s32 %s9, 1
      // Predicated region
      $region13: #{linear_pointwise.1} parent=11 // pred_check
        %p118 = pneg %p56
      $region14: #{linear_pointwise.1} parent=11 // pred_check_branch
        %120 = sbr.rel (%p118) target = $region16
      $region15: #{linear_pointwise.1} parent=11 // pred_region
        _
      $region16: #{linear_pointwise.1} parent=11 // pred_fallthru
        _
      // Predicated region
      $region17: #{linear_pointwise.1} parent=11 // pred_check
        %p121 = pneg %p77
      $region18: #{linear_pointwise.1} parent=11 // pred_check_branch
        %123 = sbr.rel (%p121) target = $region20
      $region19: #{linear_pointwise.1} parent=11 // pred_region
        _
      $region20: #{linear_pointwise.1} parent=11 // pred_fallthru
        _
    $region12: #{linear_pointwise.1} parent=5 // pred_fallthru
      _
    %p124 = scmp.lt.s32.totalorder %s9, 2
    // Predicated region
    $region21: #{linear_pointwise.1} parent=5 // pred_check
      %p125 = pneg %p124
    $region22: #{linear_pointwise.1} parent=5 // pred_check_branch
      %127 = sbr.rel (%p125) target = $region24
    $region23: #{linear_pointwise.1} parent=5 // pred_region
      // Predicated region
      $region25: #{linear_pointwise.1} parent=23 // pred_check
        %p128 = pneg %p29
      $region26: #{linear_pointwise.1} parent=23 // pred_check_branch
        %130 = sbr.rel (%p128) target = $region28
      $region27: #{linear_pointwise.1} parent=23 // pred_region
        %s131 = smul.u32 2, %s9
        %p132 = scmp.lt.s32.totalorder %s131, 3
        %s133 = scalar_select %p132, %s131, 3
        %s134 = smul.addr %s133, 8
        %s135 = scalar_lea.vmem %s0, %s134
        %s136 = smul.u32 2, %s9
      $region28: #{linear_pointwise.1} parent=23 // pred_fallthru
        _
    $region24: #{linear_pointwise.1} parent=5 // pred_fallthru
      _
    %p137 = scmp.le.s32.totalorder 1, %s9
    %p138 = scmp.lt.s32.totalorder %s9, 3
    %p139 = pnand %p137, %p138
    %p140 = pneg %p139
    // Predicated region
    $region29: #{linear_pointwise.1} parent=5 // pred_check
      _
    $region30: #{linear_pointwise.1} parent=5 // pred_check_branch
      %142 = sbr.rel (%p139) target = $region32
    $region31: #{linear_pointwise.1} parent=5 // pred_region
      %s143 = ssub.s32 %s9, 1
      %s144 = smul.u32 2, %s14
      %p145 = scmp.lt.s32.totalorder %s144, 3
      %s146 = scalar_select %p145, %s144, 3
      %s147 = smul.addr %s146, 8
      %s148 = scalar_lea.vmem %s0, %s147
      %p149 = pneg %p35
      %p150 = pneg %p32
      %p151 = pneg %p56
      %p152 = pneg %p53
      %p153 = pneg %p77
      %p154 = pneg %p74
      %p155 = pneg %p103
      %p156 = pneg %p100
      %s157 = smul.u32 2, %s14
      %p158 = scmp.lt.s32.totalorder %s157, 3
      %s159 = scalar_select %p158, %s157, 3
      %s160 = smul.addr %s159, 4
      %s161 = smul.addr %s160, 8
      %s162 = scalar_lea.vmem %s3, %s161
      %s163 = smul.u32 2, %s14
      %p164 = scmp.lt.s32.totalorder %s163, 3
      %s165 = scalar_select %p164, %s163, 3
      %s166 = smul.addr %s165, 8
      %s167 = scalar_lea.vmem %s0, %s166
      %s168 = smul.u32 2, %s14
      %s169 = smul.u32 2, %s14
      %p170 = scmp.lt.s32.totalorder %s169, 3
      %s171 = scalar_select %p170, %s169, 3
      %s172 = smul.addr %s171, 4
      %s173 = smul.addr %s172, 8
      %s174 = scalar_lea.vmem %s3, %s173
      %s175 = smul.u32 2, %s14
      %v176 = vld [vmem:[%s167] sm:$0xff]
      %v177 = vld [vmem:[%s167 + $0x8] sm:$0xff]
      %v178 = vld [vmem:[%s1] sm:$0xff]
      %v179 = vld [vmem:[%s1 + $0x8] sm:$0xff]
      %v180 = vld [vmem:[%s1 + $0x10] sm:$0xff]
      %v181 = vld [vmem:[%s1 + $0x18] sm:$0xff]
      %v182 = vld [vmem:[%s1 + $0x20] sm:$0xff]
      %v183 = vld [vmem:[%s1 + $0x28] sm:$0xff]
      %v184 = vld [vmem:[%s1 + $0x30] sm:$0xff]
      %v185 = vld [vmem:[%s1 + $0x38] sm:$0xff]
      %v186 = vld [vmem:[%s1 + $0x40] sm:$0xff]
      %v187 = vld [vmem:[%s1 + $0x48] sm:$0xff]
      %v188 = vld [vmem:[%s1 + $0x50] sm:$0xff]
      %v189 = vld [vmem:[%s1 + $0x58] sm:$0xff]
      %v190 = vld [vmem:[%s1 + $0x60] sm:$0xff]
      %v191 = vld [vmem:[%s1 + $0x68] sm:$0xff]
      %v192 = vld [vmem:[%s1 + $0x70] sm:$0xff]
      %v193 = vld [vmem:[%s1 + $0x78] sm:$0xff]
      %v194 = vld [vmem:[%s1 + $0x80] sm:$0xff]
      %v195 = vld [vmem:[%s1 + $0x88] sm:$0xff]
      %v196 = vld [vmem:[%s1 + $0x90] sm:$0xff]
      %v197 = vld [vmem:[%s1 + $0x98] sm:$0xff]
      %v198 = vld [vmem:[%s1 + $0xa0] sm:$0xff]
      %v199 = vld [vmem:[%s1 + $0xa8] sm:$0xff]
      %v200 = vld [vmem:[%s1 + $0xb0] sm:$0xff]
      %v201 = vld [vmem:[%s1 + $0xb8] sm:$0xff]
      %v202 = vld [vmem:[%s1 + $0xc0] sm:$0xff]
      %v203 = vld [vmem:[%s1 + $0xc8] sm:$0xff]
      %v204 = vld [vmem:[%s1 + $0xd0] sm:$0xff]
      %v205 = vld [vmem:[%s1 + $0xd8] sm:$0xff]
      %v206 = vld [vmem:[%s1 + $0xe0] sm:$0xff]
      %v207 = vld [vmem:[%s1 + $0xe8] sm:$0xff]
      %v208 = vld [vmem:[%s1 + $0xf0] sm:$0xff]
      %v209 = vld [vmem:[%s1 + $0xf8] sm:$0xff]
      %v210 = vld [vmem:[%s1 + $0x100] sm:$0xff]
      %v211 = vld [vmem:[%s1 + $0x108] sm:$0xff]
      %v212 = vld [vmem:[%s1 + $0x110] sm:$0xff]
      %v213 = vld [vmem:[%s1 + $0x118] sm:$0xff]
      %v214 = vld [vmem:[%s1 + $0x120] sm:$0xff]
      %v215 = vld [vmem:[%s1 + $0x128] sm:$0xff]
      %v216 = vld [vmem:[%s1 + $0x130] sm:$0xff]
      %v217 = vld [vmem:[%s1 + $0x138] sm:$0xff]
      %v218 = vld [vmem:[%s1 + $0x140] sm:$0xff]
      %v219 = vld [vmem:[%s1 + $0x148] sm:$0xff]
      %v220 = vld [vmem:[%s1 + $0x150] sm:$0xff]
      %v221 = vld [vmem:[%s1 + $0x158] sm:$0xff]
      %v222 = vld [vmem:[%s1 + $0x160] sm:$0xff]
      %v223 = vld [vmem:[%s1 + $0x168] sm:$0xff]
      %v224 = vld [vmem:[%s1 + $0x170] sm:$0xff]
      %v225 = vld [vmem:[%s1 + $0x178] sm:$0xff]
      %v226 = vld [vmem:[%s1 + $0x180] sm:$0xff]
      %v227 = vld [vmem:[%s1 + $0x188] sm:$0xff]
      %v228 = vld [vmem:[%s1 + $0x190] sm:$0xff]
      %v229 = vld [vmem:[%s1 + $0x198] sm:$0xff]
      %v230 = vld [vmem:[%s1 + $0x1a0] sm:$0xff]
      %v231 = vld [vmem:[%s1 + $0x1a8] sm:$0xff]
      %v232 = vld [vmem:[%s1 + $0x1b0] sm:$0xff]
      %v233 = vld [vmem:[%s1 + $0x1b8] sm:$0xff]
      %v234 = vld [vmem:[%s1 + $0x1c0] sm:$0xff]
      %v235 = vld [vmem:[%s1 + $0x1c8] sm:$0xff]
      %v236 = vld [vmem:[%s1 + $0x1d0] sm:$0xff]
      %v237 = vld [vmem:[%s1 + $0x1d8] sm:$0xff]
      %v238 = vld [vmem:[%s1 + $0x1e0] sm:$0xff]
      %v239 = vld [vmem:[%s1 + $0x1e8] sm:$0xff]
      %v240 = vld [vmem:[%s1 + $0x1f0] sm:$0xff]
      %v241 = vld [vmem:[%s1 + $0x1f8] sm:$0xff]
      %v242 = vld [vmem:[%s2] sm:$0xf]
      %v244 = vlaneseq
      %v245 = vshrl.u32 %v244, 7
      %v246 = vsub.s32 0, %v245
      %v247 = vrot.slane %v242, %v246
      %v248 = vlaneseq
      %v249 = vshrl.u32 %v248, 7
      %v250 = vsub.s32 1, %v249
      %v251 = vrot.slane %v242, %v250
      %v252 = vlaneseq
      %v253 = vshrl.u32 %v252, 7
      %v254 = vsub.s32 2, %v253
      %v255 = vrot.slane %v242, %v254
      %v256 = vlaneseq
      %v257 = vshrl.u32 %v256, 7
      %v258 = vsub.s32 3, %v257
      %v259 = vrot.slane %v242, %v258
      %264 = vmatprep.subr.mxu0 %v239
      %265 = vmatpush1.msra.mxu0 %v238
      %266 = vmatprep.subr.mxu0 %v235
      %267 = vmatpush1.msra.mxu0 %v234
      %268 = vmatprep.subr.mxu0 %v231
      %269 = vmatpush1.msra.mxu0 %v230
      %270 = vmatprep.subr.mxu0 %v227
      %271 = vmatpush1.msra.mxu0 %v226
      %272 = vmatprep.subr.mxu0 %v223
      %273 = vmatpush1.msra.mxu0 %v222
      %274 = vmatprep.subr.mxu0 %v219
      %275 = vmatpush1.msra.mxu0 %v218
      %276 = vmatprep.subr.mxu0 %v215
      %277 = vmatpush1.msra.mxu0 %v214
      %278 = vmatprep.subr.mxu0 %v211
      %279 = vmatpush1.msra.mxu0 %v210
      %280 = vmatprep.subr.mxu0 %v207
      %281 = vmatpush1.msra.mxu0 %v206
      %282 = vmatprep.subr.mxu0 %v203
      %283 = vmatpush1.msra.mxu0 %v202
      %284 = vmatprep.subr.mxu0 %v199
      %285 = vmatpush1.msra.mxu0 %v198
      %286 = vmatprep.subr.mxu0 %v195
      %287 = vmatpush1.msra.mxu0 %v194
      %288 = vmatprep.subr.mxu0 %v191
      %289 = vmatpush1.msra.mxu0 %v190
      %290 = vmatprep.subr.mxu0 %v187
      %291 = vmatpush1.msra.mxu0 %v186
      %292 = vmatprep.subr.mxu0 %v183
      %293 = vmatpush1.msra.mxu0 %v182
      %294 = vmatprep.subr.mxu0 %v179
      %295 = vmatpush1.msra.mxu0 %v178
      %296 = vmatprep.subr.mxu0 0.0
      %297 = vmatpush2.msra.mxu0 0.0
      %298 = vmatprep.subr.mxu0 0.0
      %299 = vmatpush2.msra.mxu0 0.0
      %300 = vmatprep.subr.mxu0 0.0
      %301 = vmatpush2.msra.mxu0 0.0
      %302 = vmatprep.subr.mxu0 0.0
      %303 = vmatpush2.msra.mxu0 0.0
      %304 = vmatprep.subr.mxu0 0.0
      %305 = vmatpush2.msra.mxu0 0.0
      %306 = vmatprep.subr.mxu0 0.0
      %307 = vmatpush2.msra.mxu0 0.0
      %308 = vmatprep.subr.mxu0 0.0
      %309 = vmatpush2.msra.mxu0 0.0
      %310 = vmatprep.subr.mxu0 0.0
      %311 = vmatpush2.msra.mxu0 0.0
      %312 = vmatprep.subr.mxu0 0.0
      %313 = vmatpush2.msra.mxu0 0.0
      %314 = vmatprep.subr.mxu0 0.0
      %315 = vmatpush2.msra.mxu0 0.0
      %316 = vmatprep.subr.mxu0 0.0
      %317 = vmatpush2.msra.mxu0 0.0
      %318 = vmatprep.subr.mxu0 0.0
      %319 = vmatpush2.msra.mxu0 0.0
      %320 = vmatprep.subr.mxu0 0.0
      %321 = vmatpush2.msra.mxu0 0.0
      %322 = vmatprep.subr.mxu0 0.0
      %323 = vmatpush2.msra.mxu0 0.0
      %324 = vmatprep.subr.mxu0 0.0
      %325 = vmatpush2.msra.mxu0 0.0
      %326 = vmatprep.subr.mxu0 0.0
      %327 = vmatpush2.msra.mxu0 0.0
      %328 = vmatprep.mubr.f32.mxu0 0.0
      %329 = vmatmul.mubr.f32.gmra.mxu0 %v176
      %v330 = vpop.f32.mrf.mxu0
      %v331 = vadd.f32 %v247, %v330
      %v332 = vpop.f32.mrf.mxu0
      %v333 = vadd.f32 %v251, %v332
      %334 = vmatprep.mubr.f32.mxu0 0.0
      %335 = vmatmul.mubr.f32.gmra.mxu0 %v177
      %v336 = vpop.f32.mrf.mxu0
      %v337 = vadd.f32 %v247, %v336
      %v338 = vpop.f32.mrf.mxu0
      %v339 = vadd.f32 %v251, %v338
      %340 = vdwg.mxu0
      %341 = vmatprep.subr.mxu0 %v241
      %342 = vmatpush1.msra.mxu0 %v240
      %343 = vmatprep.subr.mxu0 %v237
      %344 = vmatpush1.msra.mxu0 %v236
      %345 = vmatprep.subr.mxu0 %v233
      %346 = vmatpush1.msra.mxu0 %v232
      %347 = vmatprep.subr.mxu0 %v229
      %348 = vmatpush1.msra.mxu0 %v228
      %349 = vmatprep.subr.mxu0 %v225
      %350 = vmatpush1.msra.mxu0 %v224
      %351 = vmatprep.subr.mxu0 %v221
      %352 = vmatpush1.msra.mxu0 %v220
      %353 = vmatprep.subr.mxu0 %v217
      %354 = vmatpush1.msra.mxu0 %v216
      %355 = vmatprep.subr.mxu0 %v213
      %356 = vmatpush1.msra.mxu0 %v212
      %357 = vmatprep.subr.mxu0 %v209
      %358 = vmatpush1.msra.mxu0 %v208
      %359 = vmatprep.subr.mxu0 %v205
      %360 = vmatpush1.msra.mxu0 %v204
      %361 = vmatprep.subr.mxu0 %v201
      %362 = vmatpush1.msra.mxu0 %v200
      %363 = vmatprep.subr.mxu0 %v197
      %364 = vmatpush1.msra.mxu0 %v196
      %365 = vmatprep.subr.mxu0 %v193
      %366 = vmatpush1.msra.mxu0 %v192
      %367 = vmatprep.subr.mxu0 %v189
      %368 = vmatpush1.msra.mxu0 %v188
      %369 = vmatprep.subr.mxu0 %v185
      %370 = vmatpush1.msra.mxu0 %v184
      %371 = vmatprep.subr.mxu0 %v181
      %372 = vmatpush1.msra.mxu0 %v180
      %373 = vmatprep.subr.mxu0 0.0
      %374 = vmatpush2.msra.mxu0 0.0
      %375 = vmatprep.subr.mxu0 0.0
      %376 = vmatpush2.msra.mxu0 0.0
      %377 = vmatprep.subr.mxu0 0.0
      %378 = vmatpush2.msra.mxu0 0.0
      %379 = vmatprep.subr.mxu0 0.0
      %380 = vmatpush2.msra.mxu0 0.0
      %381 = vmatprep.subr.mxu0 0.0
      %382 = vmatpush2.msra.mxu0 0.0
      %383 = vmatprep.subr.mxu0 0.0
      %384 = vmatpush2.msra.mxu0 0.0
      %385 = vmatprep.subr.mxu0 0.0
      %386 = vmatpush2.msra.mxu0 0.0
      %387 = vmatprep.subr.mxu0 0.0
      %388 = vmatpush2.msra.mxu0 0.0
      %389 = vmatprep.subr.mxu0 0.0
      %390 = vmatpush2.msra.mxu0 0.0
      %391 = vmatprep.subr.mxu0 0.0
      %392 = vmatpush2.msra.mxu0 0.0
      %393 = vmatprep.subr.mxu0 0.0
      %394 = vmatpush2.msra.mxu0 0.0
      %395 = vmatprep.subr.mxu0 0.0
      %396 = vmatpush2.msra.mxu0 0.0
      %397 = vmatprep.subr.mxu0 0.0
      %398 = vmatpush2.msra.mxu0 0.0
      %399 = vmatprep.subr.mxu0 0.0
      %400 = vmatpush2.msra.mxu0 0.0
      %401 = vmatprep.subr.mxu0 0.0
      %402 = vmatpush2.msra.mxu0 0.0
      %403 = vmatprep.subr.mxu0 0.0
      %404 = vmatpush2.msra.mxu0 0.0
      %405 = vmatprep.mubr.f32.mxu0 0.0
      %406 = vmatmul.mubr.f32.gmra.mxu0 %v176
      %v407 = vpop.f32.mrf.mxu0
      %v408 = vadd.f32 %v255, %v407
      %v409 = vpop.f32.mrf.mxu0
      %v410 = vadd.f32 %v259, %v409
      %411 = vmatprep.mubr.f32.mxu0 0.0
      %412 = vmatmul.mubr.f32.gmra.mxu0 %v177
      %v413 = vpop.f32.mrf.mxu0
      %v414 = vadd.f32 %v255, %v413
      %v415 = vpop.f32.mrf.mxu0
      %v416 = vadd.f32 %v259, %v415
      %417 = vdwg.mxu0
      %418 = vst [vmem:[%s174] sm:$0xff] %v331
      %419 = vst [vmem:[%s174 + $0x8] sm:$0xff] %v333
      %420 = vst [vmem:[%s174 + $0x10] sm:$0xff] %v408
      %421 = vst [vmem:[%s174 + $0x18] sm:$0xff] %v410
      %422 = vst [vmem:[%s174 + $0x20] sm:$0xff] %v337
      %423 = vst [vmem:[%s174 + $0x28] sm:$0xff] %v339
      %424 = vst [vmem:[%s174 + $0x30] sm:$0xff] %v414
      %425 = vst [vmem:[%s174 + $0x38] sm:$0xff] %v416
      %s426 = smul.u32 2, %s14
      %p427 = scmp.lt.s32.totalorder %s426, 3
      %s428 = scalar_select %p427, %s426, 3
      %s429 = smul.addr %s428, 4
      %s430 = smul.addr %s429, 8
      %s431 = scalar_lea.vmem %s3, %s430
      // Predicated region
      $region33: #{linear_pointwise.1} parent=31 // pred_check
        %p432 = pneg %p100
      $region34: #{linear_pointwise.1} parent=31 // pred_check_branch
        %434 = sbr.rel (%p432) target = $region36
      $region35: #{linear_pointwise.1} parent=31 // pred_region
        %s435 = smul.u32 2, %s14
      $region36: #{linear_pointwise.1} parent=31 // pred_fallthru
        _
    $region32: #{linear_pointwise.1} parent=5 // pred_fallthru
      _
    %p436 = scmp.le.s32.totalorder 2, %s9
    // Predicated region
    $region37: #{linear_pointwise.1} parent=5 // pred_check
      %p437 = pneg %p436
    $region38: #{linear_pointwise.1} parent=5 // pred_check_branch
      %439 = sbr.rel (%p437) target = $region40
    $region39: #{linear_pointwise.1} parent=5 // pred_region
      %s440 = ssub.s32 %s9, 2
      // Predicated region
      $region41: #{linear_pointwise.1} parent=39 // pred_check
        %p441 = pneg %p106
      $region42: #{linear_pointwise.1} parent=39 // pred_check_branch
        %443 = sbr.rel (%p441) target = $region44
      $region43: #{linear_pointwise.1} parent=39 // pred_region
        %s444 = smul.u32 2, %s15
        %p445 = scmp.lt.s32.totalorder %s444, 3
        %s446 = scalar_select %p445, %s444, 3
        %s447 = smul.addr %s446, 4
        %s448 = smul.addr %s447, 8
        %s449 = scalar_lea.vmem %s3, %s448
      $region44: #{linear_pointwise.1} parent=39 // pred_fallthru
        _
    $region40: #{linear_pointwise.1} parent=5 // pred_fallthru
      _
  $region6: #{linear_pointwise.1} parent=0 // loop_footer
    %s13 = sadd.s32 1, %s9
  $region7: #{linear_pointwise.1} parent=0 // loop_footer_branch
    %8 = sbr.rel target = $region3
  $region8: #{linear_pointwise.1} parent=0 // loop_exit
    _

</llo_original>
